<compile_context>
chip_gen: v6e
topology: v6e:2x2x1
jax: 0.10.0
libtpu: 0.0.40
codegen_flags: <defaults>
</compile_context>

<pallas_src>
import functools

import jax
import jax.numpy as jnp
from jax import lax
from jax.experimental import pallas as pl
from jax.experimental.pallas import tpu as pltpu


def _fused_binary_connect_kernel(x_ref, w1_ref, w2_ref, w3_ref, w4_ref, o_ref, *, eps):
    """Single-invocation fused forward: all operands / output are full VMEM blocks."""

    def bin_linear_bn(h, w_ref, apply_relu):
        # Weights hold sign(W) in {-1, 0, +1}: exact in bf16, exact after upcast.
        # f32 x f32 matmul with f32 accumulation on the MXU — keeps the result
        # bit-close to the f32 reference (bf16 activations drifted past tolerance).
        w = w_ref[...].astype(jnp.float32)
        y = jnp.dot(h, w, preferred_element_type=jnp.float32)
        # BatchNorm1d, training mode, affine=False: per-feature (column) stats over
        # the whole batch, biased variance, eps added inside the rsqrt.
        mean = jnp.mean(y, axis=0, keepdims=True)
        centered = y - mean
        var = jnp.mean(centered * centered, axis=0, keepdims=True)
        y = centered * lax.rsqrt(var + eps)
        if apply_relu:
            y = jnp.maximum(y, 0.0)
        return y

    h = x_ref[...].astype(jnp.float32)
    h = bin_linear_bn(h, w1_ref, True)    # fc1 -> bn1 -> relu
    h = bin_linear_bn(h, w2_ref, True)    # fc2 -> bn2 -> relu
    h = bin_linear_bn(h, w3_ref, True)    # fc3 -> bn3 -> relu
    h = bin_linear_bn(h, w4_ref, False)   # fc4 -> bn4 (no relu)
    o_ref[...] = h.astype(o_ref.dtype)


@functools.partial(jax.jit, static_argnames=("in_features", "eps"))
def binary_connect_forward(x, params, *, in_features, eps=1e-4):
    """Full BinaryConnect forward.  x: any shape flattening to (-1, in_features).

    params: 4 weight matrices stored as (in, out) == PyTorch Linear weight.T.
    """
    x = x.reshape(-1, in_features).astype(jnp.float32)
    B = x.shape[0]

    w1, w2, w3, w4 = params
    assert w1.shape[0] == in_features
    assert w2.shape[0] == w1.shape[1]
    assert w3.shape[0] == w2.shape[1]
    assert w4.shape[0] == w3.shape[1]
    out_features = w4.shape[1]
    # Keep everything tile-friendly: feature dims on lanes (multiples of 128).
    for d in (in_features, w1.shape[1], w2.shape[1], w3.shape[1], out_features):
        assert d % 128 == 0, "feature dims must be multiples of 128"

    # Hoist binarization out of the kernel: sign(W) in {-1,0,+1} is exact in bf16,
    # so bf16 storage halves weight DMA without any precision loss.
    w_bins = tuple(jnp.sign(w).astype(jnp.bfloat16) for w in (w1, w2, w3, w4))

    kernel = functools.partial(_fused_binary_connect_kernel, eps=eps)
    vmem_spec = pl.BlockSpec(memory_space=pltpu.MemorySpace.VMEM)

    return pl.pallas_call(
        kernel,
        out_shape=jax.ShapeDtypeStruct((B, out_features), jnp.float32),
        # No grid: single kernel invocation, every operand fully VMEM-resident
        # (x: 4 KiB, bf16 weights: ~448 KiB, out: 4 KiB at the test shapes).
        in_specs=[vmem_spec] * 5,
        out_specs=vmem_spec,
    )(x, *w_bins)


def _reference_forward(x, params, *, in_features, eps=1e-4):
    # Pure-JAX f32 reference (precision=HIGHEST so XLA does not silently lower
    # the f32 matmul to bf16 passes on TPU).
    x = x.reshape(-1, in_features).astype(jnp.float32)
    for i, w in enumerate(params):
        y = jnp.dot(x, jnp.sign(w), precision=jax.lax.Precision.HIGHEST)
        mean = jnp.mean(y, axis=0, keepdims=True)
        var = jnp.mean((y - mean) ** 2, axis=0, keepdims=True)
        y = (y - mean) / jnp.sqrt(var + eps)
        x = jnp.maximum(y, 0.0) if i < len(params) - 1 else y
    return x


if __name__ == "__main__":
    # Small, TPU-tile-friendly shapes consistent with the module:
    #   in_features=128, num_units=256, out_features=128, batch=8
    in_features, num_units, out_features, batch = 128, 256, 128, 8
    eps = 1e-4

    key = jax.random.PRNGKey(0)
    kx, k1, k2, k3, k4 = jax.random.split(key, 5)

    x = jax.random.normal(kx, (batch, in_features), dtype=jnp.float32)
    # Weights stored as (in, out) == PyTorch Linear weight.T; deterministic init.
    params = (
        jax.random.normal(k1, (in_features, num_units), dtype=jnp.float32) * 0.05,
        jax.random.normal(k2, (num_units, num_units), dtype=jnp.float32) * 0.05,
        jax.random.normal(k3, (num_units, num_units), dtype=jnp.float32) * 0.05,
        jax.random.normal(k4, (num_units, out_features), dtype=jnp.float32) * 0.05,
    )

    out = binary_connect_forward(x, params, in_features=in_features, eps=eps)
    out = jax.block_until_ready(out)

    ref = _reference_forward(x, params, in_features=in_features, eps=eps)
    assert out.shape == (batch, out_features)
    # f32 compute on both sides: drift is at the 1e-5 level; keep generous margin.
    assert jnp.allclose(out, ref, atol=1e-2, rtol=1e-2), (
        float(jnp.max(jnp.abs(out - ref))))

    print("KERNEL_OK")
</pallas_src>

<mosaic_0001>
module attributes {stable_mosaic.version = 11 : i64} {
  func.func @_fused_binary_connect_kernel(%arg0: memref<8x128xf32, #tpu.memory_space<vmem>>, %arg1: memref<128x256xbf16, #tpu.memory_space<vmem>>, %arg2: memref<256x256xbf16, #tpu.memory_space<vmem>>, %arg3: memref<256x256xbf16, #tpu.memory_space<vmem>>, %arg4: memref<256x128xbf16, #tpu.memory_space<vmem>>, %arg5: memref<8x128xf32, #tpu.memory_space<vmem>>) attributes {dimension_semantics = [], scalar_prefetch = 0 : i64, scratch_operands = 0 : i64, tpu.core_type = #tpu.core_type<tc>} {
    %c0 = arith.constant 0 : index
    %c0_0 = arith.constant 0 : index
    %0 = vector.load %arg0[%c0, %c0_0] : memref<8x128xf32, #tpu.memory_space<vmem>>, vector<8x128xf32>
    %c0_1 = arith.constant 0 : index
    %c0_2 = arith.constant 0 : index
    %1 = vector.load %arg1[%c0_1, %c0_2] : memref<128x256xbf16, #tpu.memory_space<vmem>>, vector<128x256xbf16>
    %2 = arith.extf %1 : vector<128x256xbf16> to vector<128x256xf32>
    %cst = arith.constant dense<0.000000e+00> : vector<8x256xf32>
    %3 = tpu.matmul %0, %2, %cst {dimension_numbers = #tpu.dot_dimension_numbers<[1], [0], [0], [1], [0, 0, 1, 1], [], []>} : vector<8x128xf32>, vector<128x256xf32>, vector<8x256xf32> -> vector<8x256xf32>
    %cst_3 = arith.constant dense<0.000000e+00> : vector<256xf32>
    %4 = vector.multi_reduction <add>, %3, %cst_3 [0] : vector<8x256xf32> to vector<256xf32>
    %5 = vector.shape_cast %4 : vector<256xf32> to vector<1x256xf32>
    %cst_4 = arith.constant 8.000000e+00 : f32
    %6 = vector.broadcast %cst_4 : f32 to vector<1x256xf32>
    %7 = arith.divf %5, %6 : vector<1x256xf32>
    %8 = vector.broadcast %7 : vector<1x256xf32> to vector<8x256xf32>
    %9 = arith.subf %3, %8 : vector<8x256xf32>
    %10 = arith.mulf %9, %9 : vector<8x256xf32>
    %cst_5 = arith.constant dense<0.000000e+00> : vector<256xf32>
    %11 = vector.multi_reduction <add>, %10, %cst_5 [0] : vector<8x256xf32> to vector<256xf32>
    %12 = vector.shape_cast %11 : vector<256xf32> to vector<1x256xf32>
    %cst_6 = arith.constant 8.000000e+00 : f32
    %13 = vector.broadcast %cst_6 : f32 to vector<1x256xf32>
    %14 = arith.divf %12, %13 : vector<1x256xf32>
    %cst_7 = arith.constant 9.99999974E-5 : f32
    %15 = vector.broadcast %cst_7 : f32 to vector<1x256xf32>
    %16 = arith.addf %14, %15 : vector<1x256xf32>
    %17 = math.rsqrt %16 : vector<1x256xf32>
    %18 = vector.broadcast %17 : vector<1x256xf32> to vector<8x256xf32>
    %19 = arith.mulf %9, %18 : vector<8x256xf32>
    %cst_8 = arith.constant 0.000000e+00 : f32
    %20 = vector.broadcast %cst_8 : f32 to vector<8x256xf32>
    %21 = arith.maximumf %19, %20 : vector<8x256xf32>
    %c0_9 = arith.constant 0 : index
    %c0_10 = arith.constant 0 : index
    %22 = vector.load %arg2[%c0_9, %c0_10] : memref<256x256xbf16, #tpu.memory_space<vmem>>, vector<256x256xbf16>
    %23 = arith.extf %22 : vector<256x256xbf16> to vector<256x256xf32>
    %cst_11 = arith.constant dense<0.000000e+00> : vector<8x256xf32>
    %24 = tpu.matmul %21, %23, %cst_11 {dimension_numbers = #tpu.dot_dimension_numbers<[1], [0], [0], [1], [0, 0, 1, 1], [], []>} : vector<8x256xf32>, vector<256x256xf32>, vector<8x256xf32> -> vector<8x256xf32>
    %cst_12 = arith.constant dense<0.000000e+00> : vector<256xf32>
    %25 = vector.multi_reduction <add>, %24, %cst_12 [0] : vector<8x256xf32> to vector<256xf32>
    %26 = vector.shape_cast %25 : vector<256xf32> to vector<1x256xf32>
    %cst_13 = arith.constant 8.000000e+00 : f32
    %27 = vector.broadcast %cst_13 : f32 to vector<1x256xf32>
    %28 = arith.divf %26, %27 : vector<1x256xf32>
    %29 = vector.broadcast %28 : vector<1x256xf32> to vector<8x256xf32>
    %30 = arith.subf %24, %29 : vector<8x256xf32>
    %31 = arith.mulf %30, %30 : vector<8x256xf32>
    %cst_14 = arith.constant dense<0.000000e+00> : vector<256xf32>
    %32 = vector.multi_reduction <add>, %31, %cst_14 [0] : vector<8x256xf32> to vector<256xf32>
    %33 = vector.shape_cast %32 : vector<256xf32> to vector<1x256xf32>
    %cst_15 = arith.constant 8.000000e+00 : f32
    %34 = vector.broadcast %cst_15 : f32 to vector<1x256xf32>
    %35 = arith.divf %33, %34 : vector<1x256xf32>
    %cst_16 = arith.constant 9.99999974E-5 : f32
    %36 = vector.broadcast %cst_16 : f32 to vector<1x256xf32>
    %37 = arith.addf %35, %36 : vector<1x256xf32>
    %38 = math.rsqrt %37 : vector<1x256xf32>
    %39 = vector.broadcast %38 : vector<1x256xf32> to vector<8x256xf32>
    %40 = arith.mulf %30, %39 : vector<8x256xf32>
    %cst_17 = arith.constant 0.000000e+00 : f32
    %41 = vector.broadcast %cst_17 : f32 to vector<8x256xf32>
    %42 = arith.maximumf %40, %41 : vector<8x256xf32>
    %c0_18 = arith.constant 0 : index
    %c0_19 = arith.constant 0 : index
    %43 = vector.load %arg3[%c0_18, %c0_19] : memref<256x256xbf16, #tpu.memory_space<vmem>>, vector<256x256xbf16>
    %44 = arith.extf %43 : vector<256x256xbf16> to vector<256x256xf32>
    %cst_20 = arith.constant dense<0.000000e+00> : vector<8x256xf32>
    %45 = tpu.matmul %42, %44, %cst_20 {dimension_numbers = #tpu.dot_dimension_numbers<[1], [0], [0], [1], [0, 0, 1, 1], [], []>} : vector<8x256xf32>, vector<256x256xf32>, vector<8x256xf32> -> vector<8x256xf32>
    %cst_21 = arith.constant dense<0.000000e+00> : vector<256xf32>
    %46 = vector.multi_reduction <add>, %45, %cst_21 [0] : vector<8x256xf32> to vector<256xf32>
    %47 = vector.shape_cast %46 : vector<256xf32> to vector<1x256xf32>
    %cst_22 = arith.constant 8.000000e+00 : f32
    %48 = vector.broadcast %cst_22 : f32 to vector<1x256xf32>
    %49 = arith.divf %47, %48 : vector<1x256xf32>
    %50 = vector.broadcast %49 : vector<1x256xf32> to vector<8x256xf32>
    %51 = arith.subf %45, %50 : vector<8x256xf32>
    %52 = arith.mulf %51, %51 : vector<8x256xf32>
    %cst_23 = arith.constant dense<0.000000e+00> : vector<256xf32>
    %53 = vector.multi_reduction <add>, %52, %cst_23 [0] : vector<8x256xf32> to vector<256xf32>
    %54 = vector.shape_cast %53 : vector<256xf32> to vector<1x256xf32>
    %cst_24 = arith.constant 8.000000e+00 : f32
    %55 = vector.broadcast %cst_24 : f32 to vector<1x256xf32>
    %56 = arith.divf %54, %55 : vector<1x256xf32>
    %cst_25 = arith.constant 9.99999974E-5 : f32
    %57 = vector.broadcast %cst_25 : f32 to vector<1x256xf32>
    %58 = arith.addf %56, %57 : vector<1x256xf32>
    %59 = math.rsqrt %58 : vector<1x256xf32>
    %60 = vector.broadcast %59 : vector<1x256xf32> to vector<8x256xf32>
    %61 = arith.mulf %51, %60 : vector<8x256xf32>
    %cst_26 = arith.constant 0.000000e+00 : f32
    %62 = vector.broadcast %cst_26 : f32 to vector<8x256xf32>
    %63 = arith.maximumf %61, %62 : vector<8x256xf32>
    %c0_27 = arith.constant 0 : index
    %c0_28 = arith.constant 0 : index
    %64 = vector.load %arg4[%c0_27, %c0_28] : memref<256x128xbf16, #tpu.memory_space<vmem>>, vector<256x128xbf16>
    %65 = arith.extf %64 : vector<256x128xbf16> to vector<256x128xf32>
    %cst_29 = arith.constant dense<0.000000e+00> : vector<8x128xf32>
    %66 = tpu.matmul %63, %65, %cst_29 {dimension_numbers = #tpu.dot_dimension_numbers<[1], [0], [0], [1], [0, 0, 1, 1], [], []>} : vector<8x256xf32>, vector<256x128xf32>, vector<8x128xf32> -> vector<8x128xf32>
    %cst_30 = arith.constant dense<0.000000e+00> : vector<128xf32>
    %67 = vector.multi_reduction <add>, %66, %cst_30 [0] : vector<8x128xf32> to vector<128xf32>
    %68 = vector.shape_cast %67 : vector<128xf32> to vector<1x128xf32>
    %cst_31 = arith.constant 8.000000e+00 : f32
    %69 = vector.broadcast %cst_31 : f32 to vector<1x128xf32>
    %70 = arith.divf %68, %69 : vector<1x128xf32>
    %71 = vector.broadcast %70 : vector<1x128xf32> to vector<8x128xf32>
    %72 = arith.subf %66, %71 : vector<8x128xf32>
    %73 = arith.mulf %72, %72 : vector<8x128xf32>
    %cst_32 = arith.constant dense<0.000000e+00> : vector<128xf32>
    %74 = vector.multi_reduction <add>, %73, %cst_32 [0] : vector<8x128xf32> to vector<128xf32>
    %75 = vector.shape_cast %74 : vector<128xf32> to vector<1x128xf32>
    %cst_33 = arith.constant 8.000000e+00 : f32
    %76 = vector.broadcast %cst_33 : f32 to vector<1x128xf32>
    %77 = arith.divf %75, %76 : vector<1x128xf32>
    %cst_34 = arith.constant 9.99999974E-5 : f32
    %78 = vector.broadcast %cst_34 : f32 to vector<1x128xf32>
    %79 = arith.addf %77, %78 : vector<1x128xf32>
    %80 = math.rsqrt %79 : vector<1x128xf32>
    %81 = vector.broadcast %80 : vector<1x128xf32> to vector<8x128xf32>
    %82 = arith.mulf %72, %81 : vector<8x128xf32>
    %c0_35 = arith.constant 0 : index
    %c0_36 = arith.constant 0 : index
    %83 = vector.load %arg5[%c0_35, %c0_36] : memref<8x128xf32, #tpu.memory_space<vmem>>, vector<8x128xf32>
    tpu.vector_store %arg5[%c0_35, %c0_36], %82 {strides = array<i32>} : memref<8x128xf32, #tpu.memory_space<vmem>>, vector<8x128xf32>,
    return
  }
}

</mosaic_0001>

<llo_original>
// kernel: binary_connect_forward.1
$region0: #{binary_connect_forward.1}
  #allocation0 [shape = 'u32[]', space=smem, size = 0x4, offset = 0x4, fixed_abs, tag = 'smem constant byte address 0x4 - core index']
  #allocation1 [shape = 'u32[144,128]{1,0:T(1,128)}', space=vmem, size = 0x12000, scoped, tag = 'internal scratch']
  %s0 = inlined_call_operand.vmem [shape: f32[8,128], index: 0, kind: input, shape index: {}]
  %s1 = inlined_call_operand.vmem [shape: bf16[128,256], index: 1, kind: input, shape index: {}]
  %s2 = inlined_call_operand.vmem [shape: bf16[256,256], index: 2, kind: input, shape index: {}]
  %s3 = inlined_call_operand.vmem [shape: bf16[256,256], index: 3, kind: input, shape index: {}]
  %s4 = inlined_call_operand.vmem [shape: bf16[256,128], index: 4, kind: input, shape index: {}]
  %s5 = inlined_call_operand.hbm [shape: f32[8,128], index: 5, kind: output, shape index: {}]
  %s6 = sld [smem:[#allocation0]]
  $region30: #{binary_connect_forward.1} parent=0
    _
  %s8 = ssub.s32 1, %s6
  %s9 = scalar_select 0, %s8, %s6
  $region1: #{binary_connect_forward.1} parent=0
    #allocation2 [shape = 'u8[4096]{0}', space=vmem, size = 0x1000, scoped, tag = 'output window, operand 0, single buffered']
    #allocation3 [shape = 's32[1]{0}', space=sflag, size = 0x4, scoped, tag = 'scoped memory for binary_connect_forward.1']
    %10 = vsyncpa [#allocation3], 0
    // Predicated region
    $region2: #{binary_connect_forward.1} parent=1 // pred_check
      _
    $region3: #{binary_connect_forward.1} parent=1 // pred_check_branch
      %12 = sbr.rel (0) target = $region5
    $region4: #{binary_connect_forward.1} parent=1 // pred_region
      _
    $region5: #{binary_connect_forward.1} parent=1 // pred_fallthru
      _
    // Predicated region
    $region6: #{binary_connect_forward.1} parent=1 // pred_check
      _
    $region7: #{binary_connect_forward.1} parent=1 // pred_check_branch
      %14 = sbr.rel (0) target = $region9
    $region8: #{binary_connect_forward.1} parent=1 // pred_region
      _
    $region9: #{binary_connect_forward.1} parent=1 // pred_fallthru
      _
    // Predicated region
    $region10: #{binary_connect_forward.1} parent=1 // pred_check
      _
    $region11: #{binary_connect_forward.1} parent=1 // pred_check_branch
      %16 = sbr.rel (0) target = $region13
    $region12: #{binary_connect_forward.1} parent=1 // pred_region
      _
    $region13: #{binary_connect_forward.1} parent=1 // pred_fallthru
      _
    // Predicated region
    $region14: #{binary_connect_forward.1} parent=1 // pred_check
      _
    $region15: #{binary_connect_forward.1} parent=1 // pred_check_branch
      %18 = sbr.rel (0) target = $region17
    $region16: #{binary_connect_forward.1} parent=1 // pred_region
      _
    $region17: #{binary_connect_forward.1} parent=1 // pred_fallthru
      _
    // Predicated region
    $region18: #{binary_connect_forward.1} parent=1 // pred_check
      _
    $region19: #{binary_connect_forward.1} parent=1 // pred_check_branch
      %20 = sbr.rel (0) target = $region21
    $region20: #{binary_connect_forward.1} parent=1 // pred_region
      _
    $region21: #{binary_connect_forward.1} parent=1 // pred_fallthru
      _
    %v21 = vld [vmem:[%s0] sm:$0xff]
    %v22 = vld [vmem:[%s1] sm:$0xff]
    %v23 = vld [vmem:[%s1 + $0x8] sm:$0xff]
    %v24 = vld [vmem:[%s1 + $0x10] sm:$0xff]
    %v25 = vld [vmem:[%s1 + $0x18] sm:$0xff]
    %v26 = vld [vmem:[%s1 + $0x20] sm:$0xff]
    %v27 = vld [vmem:[%s1 + $0x28] sm:$0xff]
    %v28 = vld [vmem:[%s1 + $0x30] sm:$0xff]
    %v29 = vld [vmem:[%s1 + $0x38] sm:$0xff]
    %v30 = vld [vmem:[%s1 + $0x40] sm:$0xff]
    %v31 = vld [vmem:[%s1 + $0x48] sm:$0xff]
    %v32 = vld [vmem:[%s1 + $0x50] sm:$0xff]
    %v33 = vld [vmem:[%s1 + $0x58] sm:$0xff]
    %v34 = vld [vmem:[%s1 + $0x60] sm:$0xff]
    %v35 = vld [vmem:[%s1 + $0x68] sm:$0xff]
    %v36 = vld [vmem:[%s1 + $0x70] sm:$0xff]
    %v37 = vld [vmem:[%s1 + $0x78] sm:$0xff]
    %v38 = vunpack.c.l.bf16 %v22
    %v39 = vunpack.c.h.bf16 %v22
    %v40 = vunpack.c.l.bf16 %v23
    %v41 = vunpack.c.h.bf16 %v23
    %v42 = vunpack.c.l.bf16 %v24
    %v43 = vunpack.c.h.bf16 %v24
    %v44 = vunpack.c.l.bf16 %v25
    %v45 = vunpack.c.h.bf16 %v25
    %v46 = vunpack.c.l.bf16 %v26
    %v47 = vunpack.c.h.bf16 %v26
    %v48 = vunpack.c.l.bf16 %v27
    %v49 = vunpack.c.h.bf16 %v27
    %v50 = vunpack.c.l.bf16 %v28
    %v51 = vunpack.c.h.bf16 %v28
    %v52 = vunpack.c.l.bf16 %v29
    %v53 = vunpack.c.h.bf16 %v29
    %v54 = vunpack.c.l.bf16 %v30
    %v55 = vunpack.c.h.bf16 %v30
    %v56 = vunpack.c.l.bf16 %v31
    %v57 = vunpack.c.h.bf16 %v31
    %v58 = vunpack.c.l.bf16 %v32
    %v59 = vunpack.c.h.bf16 %v32
    %v60 = vunpack.c.l.bf16 %v33
    %v61 = vunpack.c.h.bf16 %v33
    %v62 = vunpack.c.l.bf16 %v34
    %v63 = vunpack.c.h.bf16 %v34
    %v64 = vunpack.c.l.bf16 %v35
    %v65 = vunpack.c.h.bf16 %v35
    %v66 = vunpack.c.l.bf16 %v36
    %v67 = vunpack.c.h.bf16 %v36
    %v68 = vunpack.c.l.bf16 %v37
    %v69 = vunpack.c.h.bf16 %v37
    %70 = vmatprep.subr.mxu0 %v69
    %71 = vmatpush1.msra.mxu0 %v68
    %72 = vmatprep.subr.mxu0 %v67
    %73 = vmatpush1.msra.mxu0 %v66
    %74 = vmatprep.subr.mxu0 %v65
    %75 = vmatpush1.msra.mxu0 %v64
    %76 = vmatprep.subr.mxu0 %v63
    %77 = vmatpush1.msra.mxu0 %v62
    %78 = vmatprep.subr.mxu0 %v61
    %79 = vmatpush1.msra.mxu0 %v60
    %80 = vmatprep.subr.mxu0 %v59
    %81 = vmatpush1.msra.mxu0 %v58
    %82 = vmatprep.subr.mxu0 %v57
    %83 = vmatpush1.msra.mxu0 %v56
    %84 = vmatprep.subr.mxu0 %v55
    %85 = vmatpush1.msra.mxu0 %v54
    %86 = vmatprep.subr.mxu0 %v53
    %87 = vmatpush1.msra.mxu0 %v52
    %88 = vmatprep.subr.mxu0 %v51
    %89 = vmatpush1.msra.mxu0 %v50
    %90 = vmatprep.subr.mxu0 %v49
    %91 = vmatpush1.msra.mxu0 %v48
    %92 = vmatprep.subr.mxu0 %v47
    %93 = vmatpush1.msra.mxu0 %v46
    %94 = vmatprep.subr.mxu0 %v45
    %95 = vmatpush1.msra.mxu0 %v44
    %96 = vmatprep.subr.mxu0 %v43
    %97 = vmatpush1.msra.mxu0 %v42
    %98 = vmatprep.subr.mxu0 %v41
    %99 = vmatpush1.msra.mxu0 %v40
    %100 = vmatprep.subr.mxu0 %v39
    %101 = vmatpush1.msra.mxu0 %v38
    %102 = vmatprep.subr.mxu0 0.0
    %103 = vmatpush2.msra.mxu0 0.0
    %104 = vmatprep.subr.mxu0 0.0
    %105 = vmatpush2.msra.mxu0 0.0
    %106 = vmatprep.subr.mxu0 0.0
    %107 = vmatpush2.msra.mxu0 0.0
    %108 = vmatprep.subr.mxu0 0.0
    %109 = vmatpush2.msra.mxu0 0.0
    %110 = vmatprep.subr.mxu0 0.0
    %111 = vmatpush2.msra.mxu0 0.0
    %112 = vmatprep.subr.mxu0 0.0
    %113 = vmatpush2.msra.mxu0 0.0
    %114 = vmatprep.subr.mxu0 0.0
    %115 = vmatpush2.msra.mxu0 0.0
    %116 = vmatprep.subr.mxu0 0.0
    %117 = vmatpush2.msra.mxu0 0.0
    %118 = vmatprep.subr.mxu0 0.0
    %119 = vmatpush2.msra.mxu0 0.0
    %120 = vmatprep.subr.mxu0 0.0
    %121 = vmatpush2.msra.mxu0 0.0
    %122 = vmatprep.subr.mxu0 0.0
    %123 = vmatpush2.msra.mxu0 0.0
    %124 = vmatprep.subr.mxu0 0.0
    %125 = vmatpush2.msra.mxu0 0.0
    %126 = vmatprep.subr.mxu0 0.0
    %127 = vmatpush2.msra.mxu0 0.0
    %128 = vmatprep.subr.mxu0 0.0
    %129 = vmatpush2.msra.mxu0 0.0
    %130 = vmatprep.subr.mxu0 0.0
    %131 = vmatpush2.msra.mxu0 0.0
    %132 = vmatprep.subr.mxu0 0.0
    %133 = vmatpush2.msra.mxu0 0.0
    %134 = vmatprep.mubr.f32.mxu0 0.0
    %135 = vmatmul.mubr.f32.gmra.mxu0 %v21
    %v136 = vpop.f32.mrf.mxu0
    %v137 = vadd.f32 0.0, %v136
    %v138 = vpop.f32.mrf.mxu0
    %v139 = vadd.f32 0.0, %v138
    %140 = vdwg.mxu0
    %v141 = vrot.slane %v137, 4
    %v142 = vadd.f32 %v137, %v141
    %v143 = vrot.slane %v142, 2
    %v144 = vadd.f32 %v142, %v143
    %v145 = vrot.slane %v144, 1
    %v146 = vadd.f32 %v144, %v145
    %v147 = vrot.slane %v139, 4
    %v148 = vadd.f32 %v139, %v147
    %v149 = vrot.slane %v148, 2
    %v150 = vadd.f32 %v148, %v149
    %v151 = vrot.slane %v150, 1
    %v152 = vadd.f32 %v150, %v151
    %v153 = vrcp.pop 8.0
    %v154 = vmul.f32 %v146, %v153
    %v155 = vmul.f32 %v152, %v153
    %v156 = vsub.f32 %v137, %v154
    %v157 = vsub.f32 %v139, %v155
    %v158 = vmul.f32 %v156, %v156
    %v159 = vmul.f32 %v157, %v157
    %v160 = vrot.slane %v158, 4
    %v161 = vadd.f32 %v158, %v160
    %v162 = vrot.slane %v161, 2
    %v163 = vadd.f32 %v161, %v162
    %v164 = vrot.slane %v163, 1
    %v165 = vadd.f32 %v163, %v164
    %v166 = vrot.slane %v159, 4
    %v167 = vadd.f32 %v159, %v166
    %v168 = vrot.slane %v167, 2
    %v169 = vadd.f32 %v167, %v168
    %v170 = vrot.slane %v169, 1
    %v171 = vadd.f32 %v169, %v170
    %v172 = vmul.f32 %v165, %v153
    %v173 = vmul.f32 %v171, %v153
    %v174 = vadd.f32 %v172, 0.0001
    %v175 = vadd.f32 %v173, 0.0001
    %v176 = vrsqrt.pop %v174
    %v177 = vrsqrt.pop %v175
    %v178 = vmul.f32 %v156, %v176
    %v179 = vmul.f32 %v157, %v177
    %v180 = vmax.f32 %v178, 0.0
    %v181 = vmax.f32 %v179, 0.0
    %v182 = vld [vmem:[%s2] sm:$0xff]
    %v183 = vld [vmem:[%s2 + $0x8] sm:$0xff]
    %v184 = vld [vmem:[%s2 + $0x10] sm:$0xff]
    %v185 = vld [vmem:[%s2 + $0x18] sm:$0xff]
    %v186 = vld [vmem:[%s2 + $0x20] sm:$0xff]
    %v187 = vld [vmem:[%s2 + $0x28] sm:$0xff]
    %v188 = vld [vmem:[%s2 + $0x30] sm:$0xff]
    %v189 = vld [vmem:[%s2 + $0x38] sm:$0xff]
    %v190 = vld [vmem:[%s2 + $0x40] sm:$0xff]
    %v191 = vld [vmem:[%s2 + $0x48] sm:$0xff]
    %v192 = vld [vmem:[%s2 + $0x50] sm:$0xff]
    %v193 = vld [vmem:[%s2 + $0x58] sm:$0xff]
    %v194 = vld [vmem:[%s2 + $0x60] sm:$0xff]
    %v195 = vld [vmem:[%s2 + $0x68] sm:$0xff]
    %v196 = vld [vmem:[%s2 + $0x70] sm:$0xff]
    %v197 = vld [vmem:[%s2 + $0x78] sm:$0xff]
    %v198 = vld [vmem:[%s2 + $0x80] sm:$0xff]
    %v199 = vld [vmem:[%s2 + $0x88] sm:$0xff]
    %v200 = vld [vmem:[%s2 + $0x90] sm:$0xff]
    %v201 = vld [vmem:[%s2 + $0x98] sm:$0xff]
    %v202 = vld [vmem:[%s2 + $0xa0] sm:$0xff]
    %v203 = vld [vmem:[%s2 + $0xa8] sm:$0xff]
    %v204 = vld [vmem:[%s2 + $0xb0] sm:$0xff]
    %v205 = vld [vmem:[%s2 + $0xb8] sm:$0xff]
    %v206 = vld [vmem:[%s2 + $0xc0] sm:$0xff]
    %v207 = vld [vmem:[%s2 + $0xc8] sm:$0xff]
    %v208 = vld [vmem:[%s2 + $0xd0] sm:$0xff]
    %v209 = vld [vmem:[%s2 + $0xd8] sm:$0xff]
    %v210 = vld [vmem:[%s2 + $0xe0] sm:$0xff]
    %v211 = vld [vmem:[%s2 + $0xe8] sm:$0xff]
    %v212 = vld [vmem:[%s2 + $0xf0] sm:$0xff]
    %v213 = vld [vmem:[%s2 + $0xf8] sm:$0xff]
    %v214 = vunpack.c.l.bf16 %v182
    %v215 = vunpack.c.h.bf16 %v182
    %v216 = vunpack.c.l.bf16 %v183
    %v217 = vunpack.c.h.bf16 %v183
    %v218 = vunpack.c.l.bf16 %v184
    %v219 = vunpack.c.h.bf16 %v184
    %v220 = vunpack.c.l.bf16 %v185
    %v221 = vunpack.c.h.bf16 %v185
    %v222 = vunpack.c.l.bf16 %v186
    %v223 = vunpack.c.h.bf16 %v186
    %v224 = vunpack.c.l.bf16 %v187
    %v225 = vunpack.c.h.bf16 %v187
    %v226 = vunpack.c.l.bf16 %v188
    %v227 = vunpack.c.h.bf16 %v188
    %v228 = vunpack.c.l.bf16 %v189
    %v229 = vunpack.c.h.bf16 %v189
    %v230 = vunpack.c.l.bf16 %v190
    %v231 = vunpack.c.h.bf16 %v190
    %v232 = vunpack.c.l.bf16 %v191
    %v233 = vunpack.c.h.bf16 %v191
    %v234 = vunpack.c.l.bf16 %v192
    %v235 = vunpack.c.h.bf16 %v192
    %v236 = vunpack.c.l.bf16 %v193
    %v237 = vunpack.c.h.bf16 %v193
    %v238 = vunpack.c.l.bf16 %v194
    %v239 = vunpack.c.h.bf16 %v194
    %v240 = vunpack.c.l.bf16 %v195
    %v241 = vunpack.c.h.bf16 %v195
    %v242 = vunpack.c.l.bf16 %v196
    %v243 = vunpack.c.h.bf16 %v196
    %v244 = vunpack.c.l.bf16 %v197
    %v245 = vunpack.c.h.bf16 %v197
    %v246 = vunpack.c.l.bf16 %v198
    %v247 = vunpack.c.h.bf16 %v198
    %v248 = vunpack.c.l.bf16 %v199
    %v249 = vunpack.c.h.bf16 %v199
    %v250 = vunpack.c.l.bf16 %v200
    %v251 = vunpack.c.h.bf16 %v200
    %v252 = vunpack.c.l.bf16 %v201
    %v253 = vunpack.c.h.bf16 %v201
    %v254 = vunpack.c.l.bf16 %v202
    %v255 = vunpack.c.h.bf16 %v202
    %v256 = vunpack.c.l.bf16 %v203
    %v257 = vunpack.c.h.bf16 %v203
    %v258 = vunpack.c.l.bf16 %v204
    %v259 = vunpack.c.h.bf16 %v204
    %v260 = vunpack.c.l.bf16 %v205
    %v261 = vunpack.c.h.bf16 %v205
    %v262 = vunpack.c.l.bf16 %v206
    %v263 = vunpack.c.h.bf16 %v206
    %v264 = vunpack.c.l.bf16 %v207
    %v265 = vunpack.c.h.bf16 %v207
    %v266 = vunpack.c.l.bf16 %v208
    %v267 = vunpack.c.h.bf16 %v208
    %v268 = vunpack.c.l.bf16 %v209
    %v269 = vunpack.c.h.bf16 %v209
    %v270 = vunpack.c.l.bf16 %v210
    %v271 = vunpack.c.h.bf16 %v210
    %v272 = vunpack.c.l.bf16 %v211
    %v273 = vunpack.c.h.bf16 %v211
    %v274 = vunpack.c.l.bf16 %v212
    %v275 = vunpack.c.h.bf16 %v212
    %v276 = vunpack.c.l.bf16 %v213
    %v277 = vunpack.c.h.bf16 %v213
    %278 = vmatprep.subr.mxu0 %v245
    %279 = vmatpush1.msra.mxu0 %v244
    %280 = vmatprep.subr.mxu0 %v243
    %281 = vmatpush1.msra.mxu0 %v242
    %282 = vmatprep.subr.mxu0 %v241
    %283 = vmatpush1.msra.mxu0 %v240
    %284 = vmatprep.subr.mxu0 %v239
    %285 = vmatpush1.msra.mxu0 %v238
    %286 = vmatprep.subr.mxu0 %v237
    %287 = vmatpush1.msra.mxu0 %v236
    %288 = vmatprep.subr.mxu0 %v235
    %289 = vmatpush1.msra.mxu0 %v234
    %290 = vmatprep.subr.mxu0 %v233
    %291 = vmatpush1.msra.mxu0 %v232
    %292 = vmatprep.subr.mxu0 %v231
    %293 = vmatpush1.msra.mxu0 %v230
    %294 = vmatprep.subr.mxu0 %v229
    %295 = vmatpush1.msra.mxu0 %v228
    %296 = vmatprep.subr.mxu0 %v227
    %297 = vmatpush1.msra.mxu0 %v226
    %298 = vmatprep.subr.mxu0 %v225
    %299 = vmatpush1.msra.mxu0 %v224
    %300 = vmatprep.subr.mxu0 %v223
    %301 = vmatpush1.msra.mxu0 %v222
    %302 = vmatprep.subr.mxu0 %v221
    %303 = vmatpush1.msra.mxu0 %v220
    %304 = vmatprep.subr.mxu0 %v219
    %305 = vmatpush1.msra.mxu0 %v218
    %306 = vmatprep.subr.mxu0 %v217
    %307 = vmatpush1.msra.mxu0 %v216
    %308 = vmatprep.subr.mxu0 %v215
    %309 = vmatpush1.msra.mxu0 %v214
    %310 = vmatprep.subr.mxu0 %v277
    %311 = vmatpush2.msra.mxu0 %v276
    %312 = vmatprep.subr.mxu0 %v275
    %313 = vmatpush2.msra.mxu0 %v274
    %314 = vmatprep.subr.mxu0 %v273
    %315 = vmatpush2.msra.mxu0 %v272
    %316 = vmatprep.subr.mxu0 %v271
    %317 = vmatpush2.msra.mxu0 %v270
    %318 = vmatprep.subr.mxu0 %v269
    %319 = vmatpush2.msra.mxu0 %v268
    %320 = vmatprep.subr.mxu0 %v267
    %321 = vmatpush2.msra.mxu0 %v266
    %322 = vmatprep.subr.mxu0 %v265
    %323 = vmatpush2.msra.mxu0 %v264
    %324 = vmatprep.subr.mxu0 %v263
    %325 = vmatpush2.msra.mxu0 %v262
    %326 = vmatprep.subr.mxu0 %v261
    %327 = vmatpush2.msra.mxu0 %v260
    %328 = vmatprep.subr.mxu0 %v259
    %329 = vmatpush2.msra.mxu0 %v258
    %330 = vmatprep.subr.mxu0 %v257
    %331 = vmatpush2.msra.mxu0 %v256
    %332 = vmatprep.subr.mxu0 %v255
    %333 = vmatpush2.msra.mxu0 %v254
    %334 = vmatprep.subr.mxu0 %v253
    %335 = vmatpush2.msra.mxu0 %v252
    %336 = vmatprep.subr.mxu0 %v251
    %337 = vmatpush2.msra.mxu0 %v250
    %338 = vmatprep.subr.mxu0 %v249
    %339 = vmatpush2.msra.mxu0 %v248
    %340 = vmatprep.subr.mxu0 %v247
    %341 = vmatpush2.msra.mxu0 %v246
    %342 = vmatprep.mubr.f32.mxu0 %v181
    %343 = vmatmul.mubr.f32.gmra.mxu0 %v180
    %v344 = vpop.f32.mrf.mxu0
    %v345 = vadd.f32 0.0, %v344
    %v346 = vpop.f32.mrf.mxu0
    %v347 = vadd.f32 0.0, %v346
    %348 = vdwg.mxu0
    %v349 = vrot.slane %v345, 4
    %v350 = vadd.f32 %v345, %v349
    %v351 = vrot.slane %v350, 2
    %v352 = vadd.f32 %v350, %v351
    %v353 = vrot.slane %v352, 1
    %v354 = vadd.f32 %v352, %v353
    %v355 = vrot.slane %v347, 4
    %v356 = vadd.f32 %v347, %v355
    %v357 = vrot.slane %v356, 2
    %v358 = vadd.f32 %v356, %v357
    %v359 = vrot.slane %v358, 1
    %v360 = vadd.f32 %v358, %v359
    %v361 = vmul.f32 %v354, %v153
    %v362 = vmul.f32 %v360, %v153
    %v363 = vsub.f32 %v345, %v361
    %v364 = vsub.f32 %v347, %v362
    %v365 = vmul.f32 %v363, %v363
    %v366 = vmul.f32 %v364, %v364
    %v367 = vrot.slane %v365, 4
    %v368 = vadd.f32 %v365, %v367
    %v369 = vrot.slane %v368, 2
    %v370 = vadd.f32 %v368, %v369
    %v371 = vrot.slane %v370, 1
    %v372 = vadd.f32 %v370, %v371
    %v373 = vrot.slane %v366, 4
    %v374 = vadd.f32 %v366, %v373
    %v375 = vrot.slane %v374, 2
    %v376 = vadd.f32 %v374, %v375
    %v377 = vrot.slane %v376, 1
    %v378 = vadd.f32 %v376, %v377
    %v379 = vmul.f32 %v372, %v153
    %v380 = vmul.f32 %v378, %v153
    %v381 = vadd.f32 %v379, 0.0001
    %v382 = vadd.f32 %v380, 0.0001
    %v383 = vrsqrt.pop %v381
    %v384 = vrsqrt.pop %v382
    %v385 = vmul.f32 %v363, %v383
    %v386 = vmul.f32 %v364, %v384
    %v387 = vmax.f32 %v385, 0.0
    %v388 = vmax.f32 %v386, 0.0
    %v389 = vld [vmem:[%s3] sm:$0xff]
    %v390 = vld [vmem:[%s3 + $0x8] sm:$0xff]
    %v391 = vld [vmem:[%s3 + $0x10] sm:$0xff]
    %v392 = vld [vmem:[%s3 + $0x18] sm:$0xff]
    %v393 = vld [vmem:[%s3 + $0x20] sm:$0xff]
    %v394 = vld [vmem:[%s3 + $0x28] sm:$0xff]
    %v395 = vld [vmem:[%s3 + $0x30] sm:$0xff]
    %v396 = vld [vmem:[%s3 + $0x38] sm:$0xff]
    %v397 = vld [vmem:[%s3 + $0x40] sm:$0xff]
    %v398 = vld [vmem:[%s3 + $0x48] sm:$0xff]
    %v399 = vld [vmem:[%s3 + $0x50] sm:$0xff]
    %v400 = vld [vmem:[%s3 + $0x58] sm:$0xff]
    %v401 = vld [vmem:[%s3 + $0x60] sm:$0xff]
    %v402 = vld [vmem:[%s3 + $0x68] sm:$0xff]
    %v403 = vld [vmem:[%s3 + $0x70] sm:$0xff]
    %v404 = vld [vmem:[%s3 + $0x78] sm:$0xff]
    %v405 = vld [vmem:[%s3 + $0x80] sm:$0xff]
    %v406 = vld [vmem:[%s3 + $0x88] sm:$0xff]
    %v407 = vld [vmem:[%s3 + $0x90] sm:$0xff]
    %v408 = vld [vmem:[%s3 + $0x98] sm:$0xff]
    %v409 = vld [vmem:[%s3 + $0xa0] sm:$0xff]
    %v410 = vld [vmem:[%s3 + $0xa8] sm:$0xff]
    %v411 = vld [vmem:[%s3 + $0xb0] sm:$0xff]
    %v412 = vld [vmem:[%s3 + $0xb8] sm:$0xff]
    %v413 = vld [vmem:[%s3 + $0xc0] sm:$0xff]
    %v414 = vld [vmem:[%s3 + $0xc8] sm:$0xff]
    %v415 = vld [vmem:[%s3 + $0xd0] sm:$0xff]
    %v416 = vld [vmem:[%s3 + $0xd8] sm:$0xff]
    %v417 = vld [vmem:[%s3 + $0xe0] sm:$0xff]
    %v418 = vld [vmem:[%s3 + $0xe8] sm:$0xff]
    %v419 = vld [vmem:[%s3 + $0xf0] sm:$0xff]
    %v420 = vld [vmem:[%s3 + $0xf8] sm:$0xff]
    %v421 = vunpack.c.l.bf16 %v389
    %v422 = vunpack.c.h.bf16 %v389
    %v423 = vunpack.c.l.bf16 %v390
    %v424 = vunpack.c.h.bf16 %v390
    %v425 = vunpack.c.l.bf16 %v391
    %v426 = vunpack.c.h.bf16 %v391
    %v427 = vunpack.c.l.bf16 %v392
    %v428 = vunpack.c.h.bf16 %v392
    %v429 = vunpack.c.l.bf16 %v393
    %v430 = vunpack.c.h.bf16 %v393
    %v431 = vunpack.c.l.bf16 %v394
    %v432 = vunpack.c.h.bf16 %v394
    %v433 = vunpack.c.l.bf16 %v395
    %v434 = vunpack.c.h.bf16 %v395
    %v435 = vunpack.c.l.bf16 %v396
    %v436 = vunpack.c.h.bf16 %v396
    %v437 = vunpack.c.l.bf16 %v397
    %v438 = vunpack.c.h.bf16 %v397
    %v439 = vunpack.c.l.bf16 %v398
    %v440 = vunpack.c.h.bf16 %v398
    %v441 = vunpack.c.l.bf16 %v399
    %v442 = vunpack.c.h.bf16 %v399
    %v443 = vunpack.c.l.bf16 %v400
    %v444 = vunpack.c.h.bf16 %v400
    %v445 = vunpack.c.l.bf16 %v401
    %v446 = vunpack.c.h.bf16 %v401
    %v447 = vunpack.c.l.bf16 %v402
    %v448 = vunpack.c.h.bf16 %v402
    %v449 = vunpack.c.l.bf16 %v403
    %v450 = vunpack.c.h.bf16 %v403
    %v451 = vunpack.c.l.bf16 %v404
    %v452 = vunpack.c.h.bf16 %v404
    %v453 = vunpack.c.l.bf16 %v405
    %v454 = vunpack.c.h.bf16 %v405
    %v455 = vunpack.c.l.bf16 %v406
    %v456 = vunpack.c.h.bf16 %v406
    %v457 = vunpack.c.l.bf16 %v407
    %v458 = vunpack.c.h.bf16 %v407
    %v459 = vunpack.c.l.bf16 %v408
    %v460 = vunpack.c.h.bf16 %v408
    %v461 = vunpack.c.l.bf16 %v409
    %v462 = vunpack.c.h.bf16 %v409
    %v463 = vunpack.c.l.bf16 %v410
    %v464 = vunpack.c.h.bf16 %v410
    %v465 = vunpack.c.l.bf16 %v411
    %v466 = vunpack.c.h.bf16 %v411
    %v467 = vunpack.c.l.bf16 %v412
    %v468 = vunpack.c.h.bf16 %v412
    %v469 = vunpack.c.l.bf16 %v413
    %v470 = vunpack.c.h.bf16 %v413
    %v471 = vunpack.c.l.bf16 %v414
    %v472 = vunpack.c.h.bf16 %v414
    %v473 = vunpack.c.l.bf16 %v415
    %v474 = vunpack.c.h.bf16 %v415
    %v475 = vunpack.c.l.bf16 %v416
    %v476 = vunpack.c.h.bf16 %v416
    %v477 = vunpack.c.l.bf16 %v417
    %v478 = vunpack.c.h.bf16 %v417
    %v479 = vunpack.c.l.bf16 %v418
    %v480 = vunpack.c.h.bf16 %v418
    %v481 = vunpack.c.l.bf16 %v419
    %v482 = vunpack.c.h.bf16 %v419
    %v483 = vunpack.c.l.bf16 %v420
    %v484 = vunpack.c.h.bf16 %v420
    %485 = vmatprep.subr.mxu0 %v452
    %486 = vmatpush1.msra.mxu0 %v451
    %487 = vmatprep.subr.mxu0 %v450
    %488 = vmatpush1.msra.mxu0 %v449
    %489 = vmatprep.subr.mxu0 %v448
    %490 = vmatpush1.msra.mxu0 %v447
    %491 = vmatprep.subr.mxu0 %v446
    %492 = vmatpush1.msra.mxu0 %v445
    %493 = vmatprep.subr.mxu0 %v444
    %494 = vmatpush1.msra.mxu0 %v443
    %495 = vmatprep.subr.mxu0 %v442
    %496 = vmatpush1.msra.mxu0 %v441
    %497 = vmatprep.subr.mxu0 %v440
    %498 = vmatpush1.msra.mxu0 %v439
    %499 = vmatprep.subr.mxu0 %v438
    %500 = vmatpush1.msra.mxu0 %v437
    %501 = vmatprep.subr.mxu0 %v436
    %502 = vmatpush1.msra.mxu0 %v435
    %503 = vmatprep.subr.mxu0 %v434
    %504 = vmatpush1.msra.mxu0 %v433
    %505 = vmatprep.subr.mxu0 %v432
    %506 = vmatpush1.msra.mxu0 %v431
    %507 = vmatprep.subr.mxu0 %v430
    %508 = vmatpush1.msra.mxu0 %v429
    %509 = vmatprep.subr.mxu0 %v428
    %510 = vmatpush1.msra.mxu0 %v427
    %511 = vmatprep.subr.mxu0 %v426
    %512 = vmatpush1.msra.mxu0 %v425
    %513 = vmatprep.subr.mxu0 %v424
    %514 = vmatpush1.msra.mxu0 %v423
    %515 = vmatprep.subr.mxu0 %v422
    %516 = vmatpush1.msra.mxu0 %v421
    %517 = vmatprep.subr.mxu0 %v484
    %518 = vmatpush2.msra.mxu0 %v483
    %519 = vmatprep.subr.mxu0 %v482
    %520 = vmatpush2.msra.mxu0 %v481
    %521 = vmatprep.subr.mxu0 %v480
    %522 = vmatpush2.msra.mxu0 %v479
    %523 = vmatprep.subr.mxu0 %v478
    %524 = vmatpush2.msra.mxu0 %v477
    %525 = vmatprep.subr.mxu0 %v476
    %526 = vmatpush2.msra.mxu0 %v475
    %527 = vmatprep.subr.mxu0 %v474
    %528 = vmatpush2.msra.mxu0 %v473
    %529 = vmatprep.subr.mxu0 %v472
    %530 = vmatpush2.msra.mxu0 %v471
    %531 = vmatprep.subr.mxu0 %v470
    %532 = vmatpush2.msra.mxu0 %v469
    %533 = vmatprep.subr.mxu0 %v468
    %534 = vmatpush2.msra.mxu0 %v467
    %535 = vmatprep.subr.mxu0 %v466
    %536 = vmatpush2.msra.mxu0 %v465
    %537 = vmatprep.subr.mxu0 %v464
    %538 = vmatpush2.msra.mxu0 %v463
    %539 = vmatprep.subr.mxu0 %v462
    %540 = vmatpush2.msra.mxu0 %v461
    %541 = vmatprep.subr.mxu0 %v460
    %542 = vmatpush2.msra.mxu0 %v459
    %543 = vmatprep.subr.mxu0 %v458
    %544 = vmatpush2.msra.mxu0 %v457
    %545 = vmatprep.subr.mxu0 %v456
    %546 = vmatpush2.msra.mxu0 %v455
    %547 = vmatprep.subr.mxu0 %v454
    %548 = vmatpush2.msra.mxu0 %v453
    %549 = vmatprep.mubr.f32.mxu0 %v388
    %550 = vmatmul.mubr.f32.gmra.mxu0 %v387
    %v551 = vpop.f32.mrf.mxu0
    %v552 = vadd.f32 0.0, %v551
    %v553 = vpop.f32.mrf.mxu0
    %v554 = vadd.f32 0.0, %v553
    %555 = vdwg.mxu0
    %v556 = vrot.slane %v552, 4
    %v557 = vadd.f32 %v552, %v556
    %v558 = vrot.slane %v557, 2
    %v559 = vadd.f32 %v557, %v558
    %v560 = vrot.slane %v559, 1
    %v561 = vadd.f32 %v559, %v560
    %v562 = vrot.slane %v554, 4
    %v563 = vadd.f32 %v554, %v562
    %v564 = vrot.slane %v563, 2
    %v565 = vadd.f32 %v563, %v564
    %v566 = vrot.slane %v565, 1
    %v567 = vadd.f32 %v565, %v566
    %v568 = vmul.f32 %v561, %v153
    %v569 = vmul.f32 %v567, %v153
    %v570 = vsub.f32 %v552, %v568
    %v571 = vsub.f32 %v554, %v569
    %v572 = vmul.f32 %v570, %v570
    %v573 = vmul.f32 %v571, %v571
    %v574 = vrot.slane %v572, 4
    %v575 = vadd.f32 %v572, %v574
    %v576 = vrot.slane %v575, 2
    %v577 = vadd.f32 %v575, %v576
    %v578 = vrot.slane %v577, 1
    %v579 = vadd.f32 %v577, %v578
    %v580 = vrot.slane %v573, 4
    %v581 = vadd.f32 %v573, %v580
    %v582 = vrot.slane %v581, 2
    %v583 = vadd.f32 %v581, %v582
    %v584 = vrot.slane %v583, 1
    %v585 = vadd.f32 %v583, %v584
    %v586 = vmul.f32 %v579, %v153
    %v587 = vmul.f32 %v585, %v153
    %v588 = vadd.f32 %v586, 0.0001
    %v589 = vadd.f32 %v587, 0.0001
    %v590 = vrsqrt.pop %v588
    %v591 = vrsqrt.pop %v589
    %v592 = vmul.f32 %v570, %v590
    %v593 = vmul.f32 %v571, %v591
    %v594 = vmax.f32 %v592, 0.0
    %v595 = vmax.f32 %v593, 0.0
    %v596 = vld [vmem:[%s4] sm:$0xf]
    %v597 = vld [vmem:[%s4 + $0x4] sm:$0xf]
    %v598 = vld [vmem:[%s4 + $0x8] sm:$0xf]
    %v599 = vld [vmem:[%s4 + $0xc] sm:$0xf]
    %v600 = vld [vmem:[%s4 + $0x10] sm:$0xf]
    %v601 = vld [vmem:[%s4 + $0x14] sm:$0xf]
    %v602 = vld [vmem:[%s4 + $0x18] sm:$0xf]
    %v603 = vld [vmem:[%s4 + $0x1c] sm:$0xf]
    %v604 = vld [vmem:[%s4 + $0x20] sm:$0xf]
    %v605 = vld [vmem:[%s4 + $0x24] sm:$0xf]
    %v606 = vld [vmem:[%s4 + $0x28] sm:$0xf]
    %v607 = vld [vmem:[%s4 + $0x2c] sm:$0xf]
    %v608 = vld [vmem:[%s4 + $0x30] sm:$0xf]
    %v609 = vld [vmem:[%s4 + $0x34] sm:$0xf]
    %v610 = vld [vmem:[%s4 + $0x38] sm:$0xf]
    %v611 = vld [vmem:[%s4 + $0x3c] sm:$0xf]
    %v612 = vld [vmem:[%s4 + $0x40] sm:$0xf]
    %v613 = vld [vmem:[%s4 + $0x44] sm:$0xf]
    %v614 = vld [vmem:[%s4 + $0x48] sm:$0xf]
    %v615 = vld [vmem:[%s4 + $0x4c] sm:$0xf]
    %v616 = vld [vmem:[%s4 + $0x50] sm:$0xf]
    %v617 = vld [vmem:[%s4 + $0x54] sm:$0xf]
    %v618 = vld [vmem:[%s4 + $0x58] sm:$0xf]
    %v619 = vld [vmem:[%s4 + $0x5c] sm:$0xf]
    %v620 = vld [vmem:[%s4 + $0x60] sm:$0xf]
    %v621 = vld [vmem:[%s4 + $0x64] sm:$0xf]
    %v622 = vld [vmem:[%s4 + $0x68] sm:$0xf]
    %v623 = vld [vmem:[%s4 + $0x6c] sm:$0xf]
    %v624 = vld [vmem:[%s4 + $0x70] sm:$0xf]
    %v625 = vld [vmem:[%s4 + $0x74] sm:$0xf]
    %v626 = vld [vmem:[%s4 + $0x78] sm:$0xf]
    %v627 = vld [vmem:[%s4 + $0x7c] sm:$0xf]
    %v628 = vunpack.c.l.bf16 %v596
    %v629 = vunpack.c.l.bf16 %v597
    %v630 = vunpack.c.l.bf16 %v598
    %v631 = vunpack.c.l.bf16 %v599
    %v632 = vunpack.c.l.bf16 %v600
    %v633 = vunpack.c.l.bf16 %v601
    %v634 = vunpack.c.l.bf16 %v602
    %v635 = vunpack.c.l.bf16 %v603
    %v636 = vunpack.c.l.bf16 %v604
    %v637 = vunpack.c.l.bf16 %v605
    %v638 = vunpack.c.l.bf16 %v606
    %v639 = vunpack.c.l.bf16 %v607
    %v640 = vunpack.c.l.bf16 %v608
    %v641 = vunpack.c.l.bf16 %v609
    %v642 = vunpack.c.l.bf16 %v610
    %v643 = vunpack.c.l.bf16 %v611
    %v644 = vunpack.c.l.bf16 %v612
    %v645 = vunpack.c.l.bf16 %v613
    %v646 = vunpack.c.l.bf16 %v614
    %v647 = vunpack.c.l.bf16 %v615
    %v648 = vunpack.c.l.bf16 %v616
    %v649 = vunpack.c.l.bf16 %v617
    %v650 = vunpack.c.l.bf16 %v618
    %v651 = vunpack.c.l.bf16 %v619
    %v652 = vunpack.c.l.bf16 %v620
    %v653 = vunpack.c.l.bf16 %v621
    %v654 = vunpack.c.l.bf16 %v622
    %v655 = vunpack.c.l.bf16 %v623
    %v656 = vunpack.c.l.bf16 %v624
    %v657 = vunpack.c.l.bf16 %v625
    %v658 = vunpack.c.l.bf16 %v626
    %v659 = vunpack.c.l.bf16 %v627
    %660 = vmatprep.subr.mxu0 0.0
    %661 = vmatpush1.msra.mxu0 %v643
    %662 = vmatprep.subr.mxu0 0.0
    %663 = vmatpush1.msra.mxu0 %v642
    %664 = vmatprep.subr.mxu0 0.0
    %665 = vmatpush1.msra.mxu0 %v641
    %666 = vmatprep.subr.mxu0 0.0
    %667 = vmatpush1.msra.mxu0 %v640
    %668 = vmatprep.subr.mxu0 0.0
    %669 = vmatpush1.msra.mxu0 %v639
    %670 = vmatprep.subr.mxu0 0.0
    %671 = vmatpush1.msra.mxu0 %v638
    %672 = vmatprep.subr.mxu0 0.0
    %673 = vmatpush1.msra.mxu0 %v637
    %674 = vmatprep.subr.mxu0 0.0
    %675 = vmatpush1.msra.mxu0 %v636
    %676 = vmatprep.subr.mxu0 0.0
    %677 = vmatpush1.msra.mxu0 %v635
    %678 = vmatprep.subr.mxu0 0.0
    %679 = vmatpush1.msra.mxu0 %v634
    %680 = vmatprep.subr.mxu0 0.0
    %681 = vmatpush1.msra.mxu0 %v633
    %682 = vmatprep.subr.mxu0 0.0
    %683 = vmatpush1.msra.mxu0 %v632
    %684 = vmatprep.subr.mxu0 0.0
    %685 = vmatpush1.msra.mxu0 %v631
    %686 = vmatprep.subr.mxu0 0.0
    %687 = vmatpush1.msra.mxu0 %v630
    %688 = vmatprep.subr.mxu0 0.0
    %689 = vmatpush1.msra.mxu0 %v629
    %690 = vmatprep.subr.mxu0 0.0
    %691 = vmatpush1.msra.mxu0 %v628
    %692 = vmatprep.subr.mxu0 0.0
    %693 = vmatpush2.msra.mxu0 %v659
    %694 = vmatprep.subr.mxu0 0.0
    %695 = vmatpush2.msra.mxu0 %v658
    %696 = vmatprep.subr.mxu0 0.0
    %697 = vmatpush2.msra.mxu0 %v657
    %698 = vmatprep.subr.mxu0 0.0
    %699 = vmatpush2.msra.mxu0 %v656
    %700 = vmatprep.subr.mxu0 0.0
    %701 = vmatpush2.msra.mxu0 %v655
    %702 = vmatprep.subr.mxu0 0.0
    %703 = vmatpush2.msra.mxu0 %v654
    %704 = vmatprep.subr.mxu0 0.0
    %705 = vmatpush2.msra.mxu0 %v653
    %706 = vmatprep.subr.mxu0 0.0
    %707 = vmatpush2.msra.mxu0 %v652
    %708 = vmatprep.subr.mxu0 0.0
    %709 = vmatpush2.msra.mxu0 %v651
    %710 = vmatprep.subr.mxu0 0.0
    %711 = vmatpush2.msra.mxu0 %v650
    %712 = vmatprep.subr.mxu0 0.0
    %713 = vmatpush2.msra.mxu0 %v649
    %714 = vmatprep.subr.mxu0 0.0
    %715 = vmatpush2.msra.mxu0 %v648
    %716 = vmatprep.subr.mxu0 0.0
    %717 = vmatpush2.msra.mxu0 %v647
    %718 = vmatprep.subr.mxu0 0.0
    %719 = vmatpush2.msra.mxu0 %v646
    %720 = vmatprep.subr.mxu0 0.0
    %721 = vmatpush2.msra.mxu0 %v645
    %722 = vmatprep.subr.mxu0 0.0
    %723 = vmatpush2.msra.mxu0 %v644
    %724 = vmatprep.mubr.f32.mxu0 %v595
    %725 = vmatmul.mubr.f32.gmra.mxu0 %v594
    %v726 = vpop.f32.mrf.mxu0
    %v727 = vadd.f32 0.0, %v726
    %v728 = vpop.f32.mrf.mxu0
    %729 = vdwg.mxu0
    %v730 = vrot.slane %v727, 4
    %v731 = vadd.f32 %v727, %v730
    %v732 = vrot.slane %v731, 2
    %v733 = vadd.f32 %v731, %v732
    %v734 = vrot.slane %v733, 1
    %v735 = vadd.f32 %v733, %v734
    %v736 = vmul.f32 %v735, %v153
    %v737 = vsub.f32 %v727, %v736
    %v738 = vmul.f32 %v737, %v737
    %v739 = vrot.slane %v738, 4
    %v740 = vadd.f32 %v738, %v739
    %v741 = vrot.slane %v740, 2
    %v742 = vadd.f32 %v740, %v741
    %v743 = vrot.slane %v742, 1
    %v744 = vadd.f32 %v742, %v743
    %v745 = vmul.f32 %v744, %v153
    %v746 = vadd.f32 %v745, 0.0001
    %v747 = vrsqrt.pop %v746
    %v748 = vmul.f32 %v737, %v747
    %749 = vst [vmem:[#allocation2] sm:$0xff] %v748
    // Predicated region
    $region22: #{binary_connect_forward.1} parent=1 // pred_check
      _
    $region23: #{binary_connect_forward.1} parent=1 // pred_check_branch
      %751 = sbr.rel (0) target = $region25
    $region24: #{binary_connect_forward.1} parent=1 // pred_region
      %s753 = ssub.s32 128, 128
      %754 = vsyncadd [#allocation3], %s753
      %s756 = sshll.u32 [#allocation2], 4
      %s757 = int_to_ptr.vmem [resolvable:$true] %s756
      %759 = dma.vmem_to_hbm [thread:$0]  %s757, 128, %s5, [#allocation3]
    $region25: #{binary_connect_forward.1} parent=1 // pred_fallthru
      _
    // Predicated region
    $region26: #{binary_connect_forward.1} parent=1 // pred_check
      _
    $region27: #{binary_connect_forward.1} parent=1 // pred_check_branch
      %761 = sbr.rel (0) target = $region29
    $region28: #{binary_connect_forward.1} parent=1 // pred_region
      %762 = dma.done [#allocation3], 128
    $region29: #{binary_connect_forward.1} parent=1 // pred_fallthru
      _
    %763 = vsyncpa [#allocation3], 1

</llo_original>
